<compile_context>
chip_gen: v7x
topology: tpu7x:2x2x1
jax: 0.10.0
libtpu: 0.0.40
codegen_flags: <defaults>
</compile_context>

<pallas_src>
import functools

import jax
import jax.numpy as jnp
from jax.experimental import pallas as pl
from jax.experimental.pallas import tpu as pltpu


# ---------------------------------------------------------------------------
# Kernels
# ---------------------------------------------------------------------------

def cab_fused_kernel(x1_ref, x2_ref, w1a_ref, w1b_ref, b1_ref, w2_ref, b2_ref,
                     out_ref, *, inv_hw):
    """Whole CAB forward for one batch element, fully VMEM-resident.

    x1_ref/x2_ref/out_ref: (C, HW) native dtype; weights in f32.
    """
    x1 = x1_ref[...]
    x2 = x2_ref[...]

    # Global average pool, f32 accumulation (lane reduction on XLU).
    p1 = jnp.sum(x1, axis=-1, keepdims=True, dtype=jnp.float32) * inv_hw  # (C,1)
    p2 = jnp.sum(x2, axis=-1, keepdims=True, dtype=jnp.float32) * inv_hw  # (C,1)

    # conv1 (1x1): h = W1a @ p1 + W1b @ p2 + b1 ; ReLU
    h = (jnp.dot(w1a_ref[...], p1, preferred_element_type=jnp.float32)
         + jnp.dot(w1b_ref[...], p2, preferred_element_type=jnp.float32)
         + b1_ref[...])
    h = jnp.maximum(h, 0.0)
    # conv2 (1x1) + sigmoid
    a = jnp.dot(w2_ref[...], h, preferred_element_type=jnp.float32) + b2_ref[...]
    a = jax.nn.sigmoid(a).astype(out_ref.dtype)                           # (C,1)

    # Gate + residual, native dtype.
    out_ref[...] = a * x2 + x1


def pool_kernel(x1_ref, x2_ref, s1_ref, s2_ref, *, tile_hw, hw, mask_tail):
    """Accumulate per-channel spatial sums (f32) for one (batch, C-tile)."""
    t = pl.program_id(2)

    @pl.when(t == 0)
    def _():
        s1_ref[...] = jnp.zeros_like(s1_ref)
        s2_ref[...] = jnp.zeros_like(s2_ref)

    x1 = x1_ref[...]
    x2 = x2_ref[...]
    if mask_tail:
        # Ragged spatial tail: zero out-of-bounds lanes so the (unspecified)
        # padding values of the edge block do not perturb the pooled sums.
        lane = jax.lax.broadcasted_iota(jnp.int32, x1.shape, x1.ndim - 1)
        valid = (t * tile_hw + lane) < hw
        x1 = jnp.where(valid, x1, 0)
        x2 = jnp.where(valid, x2, 0)

    s1_ref[...] += jnp.sum(x1, axis=-1, keepdims=True, dtype=jnp.float32)
    s2_ref[...] += jnp.sum(x2, axis=-1, keepdims=True, dtype=jnp.float32)


def gate_kernel(a_ref, x1_ref, x2_ref, out_ref):
    """out = a * x2 + x1, streamed in the native input dtype.

    Out-of-bounds lanes/sublanes of ragged edge blocks are dropped on store.
    """
    a = a_ref[...].astype(out_ref.dtype)            # (tile_c, 1)
    out_ref[...] = a * x2_ref[...] + x1_ref[...]


# ---------------------------------------------------------------------------
# Wrapper helpers
# ---------------------------------------------------------------------------

def _vmem_capacity_bytes():
    """Physical VMEM capacity; falls back to the smallest (v7x per-TC)."""
    try:
        info = pltpu.get_tpu_info()
        cap = getattr(info, "vmem_capacity_bytes", None)
        if cap:
            return int(cap)
    except Exception:
        pass
    return 64 * 1024 * 1024


def _pick_tiles(C, HW, itemsize, budget):
    """Channel / spatial tile sizes for the streaming fallback.

    Sized so the gate pass (3 streamed arrays x 2 pipeline buffers) fits
    `budget`. Channels are tiled too (robustness for very large C)."""
    lane = 128
    tile_c = C
    if 6 * C * lane * itemsize > budget and C > 8:
        # Must tile channels; keep the tile a multiple of 32 sublanes so the
        # block satisfies sublane alignment for any dtype.
        tile_c = max(32, (budget // (6 * lane * itemsize)) // 32 * 32)
        tile_c = min(tile_c, C)
    per_lane_bytes = 6 * tile_c * itemsize
    tile_hw = max(lane, (budget // per_lane_bytes) // lane * lane)
    tile_hw = min(tile_hw, 16384, pl.cdiv(HW, lane) * lane)
    return int(tile_c), int(tile_hw)


# ---------------------------------------------------------------------------
# Forward
# ---------------------------------------------------------------------------

def cab_forward(x1, x2, w1, b1, w2, b2, *, force_streaming=False):
    # x1, x2: (N, C, H, W); w1: (C, 2C); b1: (C,); w2: (C, C); b2: (C,)
    N, C, H, W = x1.shape
    HW = H * W
    dtype = x1.dtype
    itemsize = jnp.dtype(dtype).itemsize
    inv_hw = float(1.0 / HW)

    x1f = x1.reshape(N, C, HW)
    x2f = x2.reshape(N, C, HW)

    # Channel-MLP parameters in f32; conv1's weight statically split into its
    # x1 / x2 halves so no in-kernel concatenate is needed.
    w1a = w1[:, :C].astype(jnp.float32)             # (C, C)
    w1b = w1[:, C:].astype(jnp.float32)             # (C, C)
    w2f = w2.astype(jnp.float32)                    # (C, C)
    b1c = b1.reshape(C, 1).astype(jnp.float32)
    b2c = b2.reshape(C, 1).astype(jnp.float32)

    cap = _vmem_capacity_bytes()

    # ---------------- fused, VMEM-resident path ------------------------------
    fused_budget = min(int(cap * 0.40), 48 * 1024 * 1024)
    fused_working = 6 * C * HW * itemsize + 8 * C * C * 4  # big blocks + weights

    if (not force_streaming) and fused_working <= fused_budget:
        vmem_limit = int(min(cap * 3 // 4,
                             max(32 * 1024 * 1024, fused_working + (8 << 20))))
        out = pl.pallas_call(
            functools.partial(cab_fused_kernel, inv_hw=inv_hw),
            out_shape=jax.ShapeDtypeStruct((N, C, HW), dtype),
            grid_spec=pltpu.PrefetchScalarGridSpec(
                num_scalar_prefetch=0,
                grid=(N,),
                in_specs=[
                    pl.BlockSpec((None, C, HW), lambda n: (n, 0, 0)),   # x1
                    pl.BlockSpec((None, C, HW), lambda n: (n, 0, 0)),   # x2
                    pl.BlockSpec((C, C), lambda n: (0, 0)),             # w1a
                    pl.BlockSpec((C, C), lambda n: (0, 0)),             # w1b
                    pl.BlockSpec((C, 1), lambda n: (0, 0)),             # b1
                    pl.BlockSpec((C, C), lambda n: (0, 0)),             # w2
                    pl.BlockSpec((C, 1), lambda n: (0, 0)),             # b2
                ],
                out_specs=pl.BlockSpec((None, C, HW), lambda n: (n, 0, 0))),
            compiler_params=pltpu.CompilerParams(
                dimension_semantics=("parallel",),
                vmem_limit_bytes=vmem_limit),
            cost_estimate=pl.CostEstimate(
                flops=int(4 * N * C * HW + 6 * N * C * C),
                transcendentals=int(N * C),
                bytes_accessed=int(3 * N * C * HW * itemsize)),
        )(x1f, x2f, w1a, w1b, b1c, w2f, b2c)
        return out.reshape(N, C, H, W)

    # ---------------- streaming fallback (oversized C*HW) --------------------
    stream_budget = min(int(cap * 0.30), 28 * 1024 * 1024)
    tile_c, tile_hw = _pick_tiles(C, HW, itemsize, stream_budget)
    Tc = pl.cdiv(C, tile_c)
    Th = pl.cdiv(HW, tile_hw)
    mask_tail = (HW % tile_hw) != 0
    vmem_limit = int(min(cap * 3 // 4, stream_budget + (8 << 20)))

    # phase 1: per-channel spatial sums (streaming reduction, no padding).
    s1, s2 = pl.pallas_call(
        functools.partial(pool_kernel, tile_hw=tile_hw, hw=HW,
                          mask_tail=mask_tail),
        out_shape=(jax.ShapeDtypeStruct((N, C, 1), jnp.float32),
                   jax.ShapeDtypeStruct((N, C, 1), jnp.float32)),
        grid_spec=pltpu.PrefetchScalarGridSpec(
            num_scalar_prefetch=0,
            grid=(N, Tc, Th),
            in_specs=[
                pl.BlockSpec((None, tile_c, tile_hw), lambda n, c, t: (n, c, t)),
                pl.BlockSpec((None, tile_c, tile_hw), lambda n, c, t: (n, c, t)),
            ],
            out_specs=[
                pl.BlockSpec((None, tile_c, 1), lambda n, c, t: (n, c, 0)),
                pl.BlockSpec((None, tile_c, 1), lambda n, c, t: (n, c, 0)),
            ]),
        compiler_params=pltpu.CompilerParams(
            dimension_semantics=("parallel", "parallel", "arbitrary"),
            vmem_limit_bytes=vmem_limit),
        cost_estimate=pl.CostEstimate(
            flops=int(2 * N * C * HW), transcendentals=0,
            bytes_accessed=int(2 * N * C * HW * itemsize)),
    )(x1f, x2f)

    # phase 2: tiny channel MLP in plain JAX ((N,C) x (C,C) — negligible).
    p1 = s1.reshape(N, C).astype(jnp.float32) * inv_hw
    p2 = s2.reshape(N, C).astype(jnp.float32) * inv_hw
    h = jax.nn.relu(p1 @ w1a.T + p2 @ w1b.T + b1c.reshape(1, C))
    a = jax.nn.sigmoid(h @ w2f.T + b2c.reshape(1, C))        # (N, C) f32

    # phase 3: gate + residual, streamed in native dtype.
    out = pl.pallas_call(
        gate_kernel,
        out_shape=jax.ShapeDtypeStruct((N, C, HW), dtype),
        grid_spec=pltpu.PrefetchScalarGridSpec(
            num_scalar_prefetch=0,
            grid=(N, Tc, Th),
            in_specs=[
                pl.BlockSpec((None, tile_c, 1), lambda n, c, t: (n, c, 0)),
                pl.BlockSpec((None, tile_c, tile_hw), lambda n, c, t: (n, c, t)),
                pl.BlockSpec((None, tile_c, tile_hw), lambda n, c, t: (n, c, t)),
            ],
            out_specs=pl.BlockSpec((None, tile_c, tile_hw),
                                   lambda n, c, t: (n, c, t))),
        compiler_params=pltpu.CompilerParams(
            dimension_semantics=("parallel", "parallel", "parallel"),
            vmem_limit_bytes=vmem_limit),
        cost_estimate=pl.CostEstimate(
            flops=int(2 * N * C * HW), transcendentals=0,
            bytes_accessed=int(3 * N * C * HW * itemsize)),
    )(a.reshape(N, C, 1), x1f, x2f)

    return out.reshape(N, C, H, W)


def cab_reference(x1, x2, w1, b1, w2, b2):
    """Pure-JAX reference mirroring the PyTorch forward."""
    x = jnp.concatenate([x1, x2], axis=1)                 # (N, 2C, H, W)
    p = jnp.mean(x, axis=(2, 3))                          # (N, 2C)
    h = jax.nn.relu(p @ w1.T + b1)                        # (N, C)
    a = jax.nn.sigmoid(h @ w2.T + b2)                     # (N, C)
    a = a[:, :, None, None]
    return a * x2 + x1


if __name__ == "__main__":
    key = jax.random.PRNGKey(0)
    k1, k2, k3, k4, k5, k6 = jax.random.split(key, 6)

    # --- primary test: fused VMEM-resident path ------------------------------
    # CAB(in_channels=2C, out_channels=C); x1, x2 each (N, C, H, W)
    N, C, H, W = 2, 4, 16, 16
    x1 = jax.random.normal(k1, (N, C, H, W), dtype=jnp.float32)
    x2 = jax.random.normal(k2, (N, C, H, W), dtype=jnp.float32)
    w1 = 0.1 * jax.random.normal(k3, (C, 2 * C), dtype=jnp.float32)  # conv1.weight[:, :, 0, 0]
    b1 = 0.1 * jax.random.normal(k4, (C,), dtype=jnp.float32)        # conv1.bias
    w2 = 0.1 * jax.random.normal(k5, (C, C), dtype=jnp.float32)      # conv2.weight[:, :, 0, 0]
    b2 = 0.1 * jax.random.normal(k6, (C,), dtype=jnp.float32)        # conv2.bias

    out = cab_forward(x1, x2, w1, b1, w2, b2)
    jax.block_until_ready(out)
    ref = cab_reference(x1, x2, w1, b1, w2, b2)
    assert out.shape == (N, C, H, W)
    assert jnp.allclose(out, ref, atol=1e-5, rtol=1e-5)

    # --- secondary test: streaming fallback with a ragged (non-128) HW -------
    N2, C2, H2, W2 = 2, 8, 13, 13
    y1 = jax.random.normal(k1, (N2, C2, H2, W2), dtype=jnp.float32)
    y2 = jax.random.normal(k2, (N2, C2, H2, W2), dtype=jnp.float32)
    v1 = 0.1 * jax.random.normal(k3, (C2, 2 * C2), dtype=jnp.float32)
    c1 = 0.1 * jax.random.normal(k4, (C2,), dtype=jnp.float32)
    v2 = 0.1 * jax.random.normal(k5, (C2, C2), dtype=jnp.float32)
    c2 = 0.1 * jax.random.normal(k6, (C2,), dtype=jnp.float32)

    out2 = cab_forward(y1, y2, v1, c1, v2, c2, force_streaming=True)
    jax.block_until_ready(out2)
    ref2 = cab_reference(y1, y2, v1, c1, v2, c2)
    assert out2.shape == (N2, C2, H2, W2)
    assert jnp.allclose(out2, ref2, atol=1e-5, rtol=1e-5)

    print("KERNEL_OK")
</pallas_src>

<mosaic_0001>
module attributes {stable_mosaic.version = 11 : i64} {
  func.func @cab_fused_kernel(%arg0: i32, %arg1: memref<1x4x256xf32, #tpu.memory_space<vmem>>, %arg2: memref<1x4x256xf32, #tpu.memory_space<vmem>>, %arg3: memref<4x4xf32, #tpu.memory_space<vmem>>, %arg4: memref<4x4xf32, #tpu.memory_space<vmem>>, %arg5: memref<4x1xf32, #tpu.memory_space<vmem>>, %arg6: memref<4x4xf32, #tpu.memory_space<vmem>>, %arg7: memref<4x1xf32, #tpu.memory_space<vmem>>, %arg8: memref<1x4x256xf32, #tpu.memory_space<vmem>>) attributes {dimension_semantics = [#tpu.dimension_semantics<parallel>], iteration_bounds = array<i64: 2>, scalar_prefetch = 0 : i64, scratch_operands = 0 : i64, tpu.core_type = #tpu.core_type<tc>, window_params = [{transform_indices = @transform_0, window_bounds = array<i64: 1, 4, 256>}, {transform_indices = @transform_1, window_bounds = array<i64: 1, 4, 256>}, {pipeline_mode = #tpu.pipeline_mode<synchronous>, transform_indices = @transform_2, window_bounds = array<i64: 4, 4>}, {pipeline_mode = #tpu.pipeline_mode<synchronous>, transform_indices = @transform_3, window_bounds = array<i64: 4, 4>}, {pipeline_mode = #tpu.pipeline_mode<synchronous>, transform_indices = @transform_4, window_bounds = array<i64: 4, 1>}, {pipeline_mode = #tpu.pipeline_mode<synchronous>, transform_indices = @transform_5, window_bounds = array<i64: 4, 4>}, {pipeline_mode = #tpu.pipeline_mode<synchronous>, transform_indices = @transform_6, window_bounds = array<i64: 4, 1>}, {transform_indices = @transform_7, window_bounds = array<i64: 1, 4, 256>}]} {
    %c0 = arith.constant 0 : index
    %c0_0 = arith.constant 0 : index
    %c0_1 = arith.constant 0 : index
    %0 = vector.load %arg1[%c0, %c0_0, %c0_1] : memref<1x4x256xf32, #tpu.memory_space<vmem>>, vector<1x4x256xf32>
    %1 = vector.shape_cast %0 : vector<1x4x256xf32> to vector<4x256xf32>
    %c0_2 = arith.constant 0 : index
    %c0_3 = arith.constant 0 : index
    %c0_4 = arith.constant 0 : index
    %2 = vector.load %arg2[%c0_2, %c0_3, %c0_4] : memref<1x4x256xf32, #tpu.memory_space<vmem>>, vector<1x4x256xf32>
    %3 = vector.shape_cast %2 : vector<1x4x256xf32> to vector<4x256xf32>
    %cst = arith.constant dense<0.000000e+00> : vector<4xf32>
    %4 = vector.multi_reduction <add>, %1, %cst [1] : vector<4x256xf32> to vector<4xf32>
    %5 = vector.shape_cast %4 : vector<4xf32> to vector<4x1xf32>
    %cst_5 = arith.constant 3.906250e-03 : f32
    %6 = vector.broadcast %cst_5 : f32 to vector<4x1xf32>
    %7 = arith.mulf %5, %6 : vector<4x1xf32>
    %cst_6 = arith.constant dense<0.000000e+00> : vector<4xf32>
    %8 = vector.multi_reduction <add>, %3, %cst_6 [1] : vector<4x256xf32> to vector<4xf32>
    %9 = vector.shape_cast %8 : vector<4xf32> to vector<4x1xf32>
    %cst_7 = arith.constant 3.906250e-03 : f32
    %10 = vector.broadcast %cst_7 : f32 to vector<4x1xf32>
    %11 = arith.mulf %9, %10 : vector<4x1xf32>
    %c0_8 = arith.constant 0 : index
    %c0_9 = arith.constant 0 : index
    %12 = vector.load %arg3[%c0_8, %c0_9] : memref<4x4xf32, #tpu.memory_space<vmem>>, vector<4x4xf32>
    %cst_10 = arith.constant dense<0.000000e+00> : vector<4x1xf32>
    %13 = tpu.matmul %12, %7, %cst_10 {dimension_numbers = #tpu.dot_dimension_numbers<[1], [0], [0], [1], [0, 0, 1, 1], [], []>} : vector<4x4xf32>, vector<4x1xf32>, vector<4x1xf32> -> vector<4x1xf32>
    %c0_11 = arith.constant 0 : index
    %c0_12 = arith.constant 0 : index
    %14 = vector.load %arg4[%c0_11, %c0_12] : memref<4x4xf32, #tpu.memory_space<vmem>>, vector<4x4xf32>
    %cst_13 = arith.constant dense<0.000000e+00> : vector<4x1xf32>
    %15 = tpu.matmul %14, %11, %cst_13 {dimension_numbers = #tpu.dot_dimension_numbers<[1], [0], [0], [1], [0, 0, 1, 1], [], []>} : vector<4x4xf32>, vector<4x1xf32>, vector<4x1xf32> -> vector<4x1xf32>
    %16 = arith.addf %13, %15 : vector<4x1xf32>
    %c0_14 = arith.constant 0 : index
    %c0_15 = arith.constant 0 : index
    %17 = vector.load %arg5[%c0_14, %c0_15] : memref<4x1xf32, #tpu.memory_space<vmem>>, vector<4x1xf32>
    %18 = arith.addf %16, %17 : vector<4x1xf32>
    %cst_16 = arith.constant 0.000000e+00 : f32
    %19 = vector.broadcast %cst_16 : f32 to vector<4x1xf32>
    %20 = arith.maximumf %18, %19 : vector<4x1xf32>
    %c0_17 = arith.constant 0 : index
    %c0_18 = arith.constant 0 : index
    %21 = vector.load %arg6[%c0_17, %c0_18] : memref<4x4xf32, #tpu.memory_space<vmem>>, vector<4x4xf32>
    %cst_19 = arith.constant dense<0.000000e+00> : vector<4x1xf32>
    %22 = tpu.matmul %21, %20, %cst_19 {dimension_numbers = #tpu.dot_dimension_numbers<[1], [0], [0], [1], [0, 0, 1, 1], [], []>} : vector<4x4xf32>, vector<4x1xf32>, vector<4x1xf32> -> vector<4x1xf32>
    %c0_20 = arith.constant 0 : index
    %c0_21 = arith.constant 0 : index
    %23 = vector.load %arg7[%c0_20, %c0_21] : memref<4x1xf32, #tpu.memory_space<vmem>>, vector<4x1xf32>
    %24 = arith.addf %22, %23 : vector<4x1xf32>
    %25 = arith.negf %24 : vector<4x1xf32>
    %26 = math.exp %25 : vector<4x1xf32>
    %cst_22 = arith.constant 1.000000e+00 : f32
    %27 = vector.broadcast %cst_22 : f32 to vector<4x1xf32>
    %28 = arith.addf %27, %26 : vector<4x1xf32>
    %29 = arith.divf %27, %28 : vector<4x1xf32>
    %30 = vector.broadcast %29 : vector<4x1xf32> to vector<4x256xf32>
    %31 = arith.mulf %30, %3 : vector<4x256xf32>
    %32 = arith.addf %31, %1 : vector<4x256xf32>
    %c0_23 = arith.constant 0 : index
    %c0_24 = arith.constant 0 : index
    %c0_25 = arith.constant 0 : index
    %33 = vector.load %arg8[%c0_23, %c0_24, %c0_25] : memref<1x4x256xf32, #tpu.memory_space<vmem>>, vector<1x4x256xf32>
    %34 = vector.shape_cast %33 : vector<1x4x256xf32> to vector<4x256xf32>
    %35 = vector.shape_cast %32 : vector<4x256xf32> to vector<1x4x256xf32>
    tpu.vector_store %arg8[%c0_23, %c0_24, %c0_25], %35 {strides = array<i32>} : memref<1x4x256xf32, #tpu.memory_space<vmem>>, vector<1x4x256xf32>,
    return
  }
  func.func @transform_0(%arg0: i32) -> (i32, i32, i32) {
    %c0_i32 = arith.constant 0 : i32
    %c0_i32_0 = arith.constant 0 : i32
    %c0_i32_1 = arith.constant 0 : i32
    return %arg0, %c0_i32, %c0_i32_0 : i32, i32, i32
  }
  func.func @transform_1(%arg0: i32) -> (i32, i32, i32) {
    %c0_i32 = arith.constant 0 : i32
    %c0_i32_0 = arith.constant 0 : i32
    %c0_i32_1 = arith.constant 0 : i32
    return %arg0, %c0_i32, %c0_i32_0 : i32, i32, i32
  }
  func.func @transform_2(%arg0: i32) -> (i32, i32) {
    %c0_i32 = arith.constant 0 : i32
    %c0_i32_0 = arith.constant 0 : i32
    %c0_i32_1 = arith.constant 0 : i32
    return %c0_i32, %c0_i32_0 : i32, i32
  }
  func.func @transform_3(%arg0: i32) -> (i32, i32) {
    %c0_i32 = arith.constant 0 : i32
    %c0_i32_0 = arith.constant 0 : i32
    %c0_i32_1 = arith.constant 0 : i32
    return %c0_i32, %c0_i32_0 : i32, i32
  }
  func.func @transform_4(%arg0: i32) -> (i32, i32) {
    %c0_i32 = arith.constant 0 : i32
    %c0_i32_0 = arith.constant 0 : i32
    %c0_i32_1 = arith.constant 0 : i32
    return %c0_i32, %c0_i32_0 : i32, i32
  }
  func.func @transform_5(%arg0: i32) -> (i32, i32) {
    %c0_i32 = arith.constant 0 : i32
    %c0_i32_0 = arith.constant 0 : i32
    %c0_i32_1 = arith.constant 0 : i32
    return %c0_i32, %c0_i32_0 : i32, i32
  }
  func.func @transform_6(%arg0: i32) -> (i32, i32) {
    %c0_i32 = arith.constant 0 : i32
    %c0_i32_0 = arith.constant 0 : i32
    %c0_i32_1 = arith.constant 0 : i32
    return %c0_i32, %c0_i32_0 : i32, i32
  }
  func.func @transform_7(%arg0: i32) -> (i32, i32, i32) {
    %c0_i32 = arith.constant 0 : i32
    %c0_i32_0 = arith.constant 0 : i32
    %c0_i32_1 = arith.constant 0 : i32
    return %arg0, %c0_i32, %c0_i32_0 : i32, i32, i32
  }
}

</mosaic_0001>

<llo_original>
// kernel: tpu_custom_call.1
$region0: #{tpu_custom_call.1}
  #allocation0 [shape = 'u32[]', space=smem, size = 0x4, offset = 0x4, fixed_abs, tag = 'smem constant byte address 0x4 - core index']
  #allocation1 [shape = 'u32[144,128]{1,0:T(1,128)}', space=vmem, size = 0x12000, scoped, tag = 'internal scratch']
  %s0 = inlined_call_operand.hbm [shape: f32[2,4,256], index: 0, kind: input, shape index: {}]
  %s1 = inlined_call_operand.hbm [shape: f32[2,4,256], index: 1, kind: input, shape index: {}]
  %s2 = inlined_call_operand.vmem [shape: f32[4,4], index: 2, kind: input, shape index: {}]
  %s3 = inlined_call_operand.vmem [shape: f32[4,4], index: 3, kind: input, shape index: {}]
  %s4 = inlined_call_operand.vmem [shape: f32[4,1], index: 4, kind: input, shape index: {}]
  %s5 = inlined_call_operand.vmem [shape: f32[4,4], index: 5, kind: input, shape index: {}]
  %s6 = inlined_call_operand.vmem [shape: f32[4,1], index: 6, kind: input, shape index: {}]
  %s7 = inlined_call_operand.hbm [shape: f32[2,4,256], index: 7, kind: output, shape index: {}]
  %s8 = sld [smem:[#allocation0]]
  $region69: #{tpu_custom_call.1} parent=0
    _
  %s10 = ssub.s32 1, %s8
  %s11 = scalar_select 0, %s10, %s8
  $region1: #{tpu_custom_call.1} parent=0
    #allocation2 [shape = 'u8[8192]{0}', space=vmem, size = 0x2000, scoped, tag = 'input window, operand 0']
    #allocation3 [shape = 's32[2]{0}', space=sflag, size = 0x8, scoped, tag = 'scoped memory for tpu_custom_call.1']
    #allocation4 [shape = 's32[2]{0}', space=sflag, size = 0x8, scoped, tag = 'scoped memory for tpu_custom_call.1']
    #allocation5 [shape = 'u8[8192]{0}', space=vmem, size = 0x2000, scoped, tag = 'input window, operand 1']
    #allocation6 [shape = 's32[2]{0}', space=sflag, size = 0x8, scoped, tag = 'scoped memory for tpu_custom_call.1']
    #allocation7 [shape = 'u8[8192]{0}', space=vmem, size = 0x2000, scoped, tag = 'output window, operand 0']
    %12 = vsyncpa [#allocation3], 0
    %s13 = scalar_lea.sflag [#allocation3], 1
    %14 = vsyncpa %s13, 0
    %15 = vsyncpa [#allocation6], 0
    %s16 = scalar_lea.sflag [#allocation6], 1
    %17 = vsyncpa %s16, 0
    %18 = vsyncpa [#allocation4], 0
    %s19 = scalar_lea.sflag [#allocation4], 1
    %20 = vsyncpa %s19, 0
    loop: start=0, step=1, limit=4
    $region2: #{tpu_custom_call.1} parent=1 // loop_pre_header
      _
    $region3: #{tpu_custom_call.1} parent=1 // loop_header
      %s22 = sphi 0, %s26
      %p23 = scmp.ge.s32.totalorder %s22, 4
      %s32 = sphi 0, %s34
      %s35 = sphi 0, %s32
      %s36 = sphi 0, %s35
      %s52 = sphi 0, %s36
      %s58 = sphi 0, %s60
      %s61 = sphi 0, %s58
      %s62 = sphi 0, %s61
      %s78 = sphi 0, %s62
      %s82 = sphi 0, %s82
      %s84 = sphi 0, %s82
      %s85 = sphi 0, %s84
      %s99 = sphi 0, %s85
      %s103 = sphi 0, %s103
      %s105 = sphi 0, %s103
      %s106 = sphi 0, %s105
      %s120 = sphi 0, %s106
      %s124 = sphi 0, %s124
      %s126 = sphi 0, %s124
      %s127 = sphi 0, %s126
      %s141 = sphi 0, %s127
      %s145 = sphi 0, %s145
      %s147 = sphi 0, %s145
      %s148 = sphi 0, %s147
      %s162 = sphi 0, %s148
      %s166 = sphi 0, %s166
      %s168 = sphi 0, %s166
      %s169 = sphi 0, %s168
      %s183 = sphi 0, %s169
      %s189 = sphi 0, %s191
      %s192 = sphi 0, %s189
      %s193 = sphi 0, %s192
      %s209 = sphi 0, %s193
    $region4: #{tpu_custom_call.1} parent=1 // loop_header_branch
      %25 = sbr.rel (%p23) target = $region8
    $region5: #{tpu_custom_call.1} parent=1 // loop_body
      %s27 = ssub.s32 %s22, 1
      %s28 = ssub.s32 %s22, 2
      %s29 = sadd.s32 %s22, 1
      %s30 = ssub.s32 %s22, %s29
      %p31 = scmp.eq.s32.totalorder %s30, 0
      %s33 = sadd.s32 %s32, 1
      %s34 = scalar_select %p31, %s32, %s33
      %p37 = pneg %p31
      %p38 = scmp.eq.s32.totalorder %s22, 1
      %p39 = por %p37, %p38
      %p40 = scmp.ne.s32.totalorder %s32, %s35
      %p41 = scmp.eq.s32.totalorder %s22, 0
      %p42 = por %p40, %p41
      %p43 = scmp.ne.s32.totalorder %s32, %s35
      %p44 = scmp.eq.s32.totalorder %s27, 1
      %p45 = por %p43, %p44
      %p46 = scmp.ne.s32.totalorder %s35, %s36
      %p47 = scmp.eq.s32.totalorder %s27, 0
      %p48 = por %p46, %p47
      %p49 = scmp.ne.s32.totalorder %s35, %s36
      %p50 = scmp.eq.s32.totalorder %s28, 1
      %p51 = por %p49, %p50
      %p53 = scmp.ne.s32.totalorder %s36, %s52
      %p54 = scmp.eq.s32.totalorder %s28, 0
      %p55 = por %p53, %p54
      %s56 = ssub.s32 %s22, %s29
      %p57 = scmp.eq.s32.totalorder %s56, 0
      %s59 = sadd.s32 %s58, 1
      %s60 = scalar_select %p57, %s58, %s59
      %p63 = pneg %p57
      %p64 = scmp.eq.s32.totalorder %s22, 1
      %p65 = por %p63, %p64
      %p66 = scmp.ne.s32.totalorder %s58, %s61
      %p67 = scmp.eq.s32.totalorder %s22, 0
      %p68 = por %p66, %p67
      %p69 = scmp.ne.s32.totalorder %s58, %s61
      %p70 = scmp.eq.s32.totalorder %s27, 1
      %p71 = por %p69, %p70
      %p72 = scmp.ne.s32.totalorder %s61, %s62
      %p73 = scmp.eq.s32.totalorder %s27, 0
      %p74 = por %p72, %p73
      %p75 = scmp.ne.s32.totalorder %s61, %s62
      %p76 = scmp.eq.s32.totalorder %s28, 1
      %p77 = por %p75, %p76
      %p79 = scmp.ne.s32.totalorder %s62, %s78
      %p80 = scmp.eq.s32.totalorder %s28, 0
      %p81 = por %p79, %p80
      %s83 = sadd.s32 %s82, 1
      %p86 = scmp.eq.s32.totalorder %s22, 1
      %p87 = scmp.ne.s32.totalorder %s82, %s84
      %p88 = scmp.eq.s32.totalorder %s22, 0
      %p89 = por %p87, %p88
      %p90 = scmp.ne.s32.totalorder %s82, %s84
      %p91 = scmp.eq.s32.totalorder %s27, 1
      %p92 = por %p90, %p91
      %p93 = scmp.ne.s32.totalorder %s84, %s85
      %p94 = scmp.eq.s32.totalorder %s27, 0
      %p95 = por %p93, %p94
      %p96 = scmp.ne.s32.totalorder %s84, %s85
      %p97 = scmp.eq.s32.totalorder %s28, 1
      %p98 = por %p96, %p97
      %p100 = scmp.ne.s32.totalorder %s85, %s99
      %p101 = scmp.eq.s32.totalorder %s28, 0
      %p102 = por %p100, %p101
      %s104 = sadd.s32 %s103, 1
      %p107 = scmp.eq.s32.totalorder %s22, 1
      %p108 = scmp.ne.s32.totalorder %s103, %s105
      %p109 = scmp.eq.s32.totalorder %s22, 0
      %p110 = por %p108, %p109
      %p111 = scmp.ne.s32.totalorder %s103, %s105
      %p112 = scmp.eq.s32.totalorder %s27, 1
      %p113 = por %p111, %p112
      %p114 = scmp.ne.s32.totalorder %s105, %s106
      %p115 = scmp.eq.s32.totalorder %s27, 0
      %p116 = por %p114, %p115
      %p117 = scmp.ne.s32.totalorder %s105, %s106
      %p118 = scmp.eq.s32.totalorder %s28, 1
      %p119 = por %p117, %p118
      %p121 = scmp.ne.s32.totalorder %s106, %s120
      %p122 = scmp.eq.s32.totalorder %s28, 0
      %p123 = por %p121, %p122
      %s125 = sadd.s32 %s124, 1
      %p128 = scmp.eq.s32.totalorder %s22, 1
      %p129 = scmp.ne.s32.totalorder %s124, %s126
      %p130 = scmp.eq.s32.totalorder %s22, 0
      %p131 = por %p129, %p130
      %p132 = scmp.ne.s32.totalorder %s124, %s126
      %p133 = scmp.eq.s32.totalorder %s27, 1
      %p134 = por %p132, %p133
      %p135 = scmp.ne.s32.totalorder %s126, %s127
      %p136 = scmp.eq.s32.totalorder %s27, 0
      %p137 = por %p135, %p136
      %p138 = scmp.ne.s32.totalorder %s126, %s127
      %p139 = scmp.eq.s32.totalorder %s28, 1
      %p140 = por %p138, %p139
      %p142 = scmp.ne.s32.totalorder %s127, %s141
      %p143 = scmp.eq.s32.totalorder %s28, 0
      %p144 = por %p142, %p143
      %s146 = sadd.s32 %s145, 1
      %p149 = scmp.eq.s32.totalorder %s22, 1
      %p150 = scmp.ne.s32.totalorder %s145, %s147
      %p151 = scmp.eq.s32.totalorder %s22, 0
      %p152 = por %p150, %p151
      %p153 = scmp.ne.s32.totalorder %s145, %s147
      %p154 = scmp.eq.s32.totalorder %s27, 1
      %p155 = por %p153, %p154
      %p156 = scmp.ne.s32.totalorder %s147, %s148
      %p157 = scmp.eq.s32.totalorder %s27, 0
      %p158 = por %p156, %p157
      %p159 = scmp.ne.s32.totalorder %s147, %s148
      %p160 = scmp.eq.s32.totalorder %s28, 1
      %p161 = por %p159, %p160
      %p163 = scmp.ne.s32.totalorder %s148, %s162
      %p164 = scmp.eq.s32.totalorder %s28, 0
      %p165 = por %p163, %p164
      %s167 = sadd.s32 %s166, 1
      %p170 = scmp.eq.s32.totalorder %s22, 1
      %p171 = scmp.ne.s32.totalorder %s166, %s168
      %p172 = scmp.eq.s32.totalorder %s22, 0
      %p173 = por %p171, %p172
      %p174 = scmp.ne.s32.totalorder %s166, %s168
      %p175 = scmp.eq.s32.totalorder %s27, 1
      %p176 = por %p174, %p175
      %p177 = scmp.ne.s32.totalorder %s168, %s169
      %p178 = scmp.eq.s32.totalorder %s27, 0
      %p179 = por %p177, %p178
      %p180 = scmp.ne.s32.totalorder %s168, %s169
      %p181 = scmp.eq.s32.totalorder %s28, 1
      %p182 = por %p180, %p181
      %p184 = scmp.ne.s32.totalorder %s169, %s183
      %p185 = scmp.eq.s32.totalorder %s28, 0
      %p186 = por %p184, %p185
      %s187 = ssub.s32 %s22, %s29
      %p188 = scmp.eq.s32.totalorder %s187, 0
      %s190 = sadd.s32 %s189, 1
      %s191 = scalar_select %p188, %s189, %s190
      %p194 = pneg %p188
      %p195 = scmp.eq.s32.totalorder %s22, 1
      %p196 = por %p194, %p195
      %p197 = scmp.ne.s32.totalorder %s189, %s192
      %p198 = scmp.eq.s32.totalorder %s22, 0
      %p199 = por %p197, %p198
      %p200 = scmp.ne.s32.totalorder %s189, %s192
      %p201 = scmp.eq.s32.totalorder %s27, 1
      %p202 = por %p200, %p201
      %p203 = scmp.ne.s32.totalorder %s192, %s193
      %p204 = scmp.eq.s32.totalorder %s27, 0
      %p205 = por %p203, %p204
      %p206 = scmp.ne.s32.totalorder %s192, %s193
      %p207 = scmp.eq.s32.totalorder %s28, 1
      %p208 = por %p206, %p207
      %p210 = scmp.ne.s32.totalorder %s193, %s209
      %p211 = scmp.eq.s32.totalorder %s28, 0
      %p212 = por %p210, %p211
      %p213 = scmp.le.s32.totalorder 1, %s22
      %p214 = scmp.lt.s32.totalorder %s22, 3
      %p215 = pnand %p213, %p214
      %p216 = pneg %p215
      // Predicated region
      $region9: #{tpu_custom_call.1} parent=5 // pred_check
        _
      $region10: #{tpu_custom_call.1} parent=5 // pred_check_branch
        %218 = sbr.rel (%p215) target = $region12
      $region11: #{tpu_custom_call.1} parent=5 // pred_region
        %s219 = ssub.s32 %s22, 1
        // Predicated region
        $region13: #{tpu_custom_call.1} parent=11 // pred_check
          %p220 = pneg %p95
        $region14: #{tpu_custom_call.1} parent=11 // pred_check_branch
          %222 = sbr.rel (%p220) target = $region16
        $region15: #{tpu_custom_call.1} parent=11 // pred_region
          _
        $region16: #{tpu_custom_call.1} parent=11 // pred_fallthru
          _
        // Predicated region
        $region17: #{tpu_custom_call.1} parent=11 // pred_check
          %p223 = pneg %p116
        $region18: #{tpu_custom_call.1} parent=11 // pred_check_branch
          %225 = sbr.rel (%p223) target = $region20
        $region19: #{tpu_custom_call.1} parent=11 // pred_region
          _
        $region20: #{tpu_custom_call.1} parent=11 // pred_fallthru
          _
        // Predicated region
        $region21: #{tpu_custom_call.1} parent=11 // pred_check
          %p226 = pneg %p137
        $region22: #{tpu_custom_call.1} parent=11 // pred_check_branch
          %228 = sbr.rel (%p226) target = $region24
        $region23: #{tpu_custom_call.1} parent=11 // pred_region
          _
        $region24: #{tpu_custom_call.1} parent=11 // pred_fallthru
          _
        // Predicated region
        $region25: #{tpu_custom_call.1} parent=11 // pred_check
          %p229 = pneg %p158
        $region26: #{tpu_custom_call.1} parent=11 // pred_check_branch
          %231 = sbr.rel (%p229) target = $region28
        $region27: #{tpu_custom_call.1} parent=11 // pred_region
          _
        $region28: #{tpu_custom_call.1} parent=11 // pred_fallthru
          _
        // Predicated region
        $region29: #{tpu_custom_call.1} parent=11 // pred_check
          %p232 = pneg %p179
        $region30: #{tpu_custom_call.1} parent=11 // pred_check_branch
          %234 = sbr.rel (%p232) target = $region32
        $region31: #{tpu_custom_call.1} parent=11 // pred_region
          _
        $region32: #{tpu_custom_call.1} parent=11 // pred_fallthru
          _
      $region12: #{tpu_custom_call.1} parent=5 // pred_fallthru
        _
      %p235 = scmp.lt.s32.totalorder %s22, 2
      // Predicated region
      $region33: #{tpu_custom_call.1} parent=5 // pred_check
        %p236 = pneg %p235
      $region34: #{tpu_custom_call.1} parent=5 // pred_check_branch
        %238 = sbr.rel (%p236) target = $region36
      $region35: #{tpu_custom_call.1} parent=5 // pred_region
        // Predicated region
        $region37: #{tpu_custom_call.1} parent=35 // pred_check
          %p239 = pneg %p42
        $region38: #{tpu_custom_call.1} parent=35 // pred_check_branch
          %241 = sbr.rel (%p239) target = $region40
        $region39: #{tpu_custom_call.1} parent=35 // pred_region
          %s242 = sand.u32 %s32, 1
          %s243 = scalar_lea.sflag [#allocation3], %s242
          %s244 = sand.u32 %s32, 1
          %s245 = smul.addr %s244, 8
          %s246 = scalar_lea.vmem [#allocation2], %s245
          %s248 = ssub.s32 128, 128
          %249 = vsyncadd %s243, %s248
          %s250 = smul.addr %s22, 2
          %s251 = smul.addr %s250, 64
          %s252 = scalar_lea.hbm %s0, %s251
          %s254 = sshll.u32 %s246, 4
          %s255 = int_to_ptr.vmem [resolvable:$true] %s254
          %257 = dma.hbm_to_vmem [thread:$0]  %s252, 128, %s255, %s243
        $region40: #{tpu_custom_call.1} parent=35 // pred_fallthru
          _
        // Predicated region
        $region41: #{tpu_custom_call.1} parent=35 // pred_check
          %p258 = pneg %p68
        $region42: #{tpu_custom_call.1} parent=35 // pred_check_branch
          %260 = sbr.rel (%p258) target = $region44
        $region43: #{tpu_custom_call.1} parent=35 // pred_region
          %s261 = sand.u32 %s58, 1
          %s262 = scalar_lea.sflag [#allocation6], %s261
          %s263 = sand.u32 %s58, 1
          %s264 = smul.addr %s263, 8
          %s265 = scalar_lea.vmem [#allocation5], %s264
          %s267 = ssub.s32 128, 128
          %268 = vsyncadd %s262, %s267
          %s269 = smul.addr %s22, 2
          %s270 = smul.addr %s269, 64
          %s271 = scalar_lea.hbm %s1, %s270
          %s273 = sshll.u32 %s265, 4
          %s274 = int_to_ptr.vmem [resolvable:$true] %s273
          %276 = dma.hbm_to_vmem [thread:$0]  %s271, 128, %s274, %s262
        $region44: #{tpu_custom_call.1} parent=35 // pred_fallthru
          _
      $region36: #{tpu_custom_call.1} parent=5 // pred_fallthru
        _
      %p277 = scmp.le.s32.totalorder 1, %s22
      %p278 = scmp.lt.s32.totalorder %s22, 3
      %p279 = pnand %p277, %p278
      %p280 = pneg %p279
      // Predicated region
      $region45: #{tpu_custom_call.1} parent=5 // pred_check
        _
      $region46: #{tpu_custom_call.1} parent=5 // pred_check_branch
        %282 = sbr.rel (%p279) target = $region48
      $region47: #{tpu_custom_call.1} parent=5 // pred_region
        %s283 = ssub.s32 %s22, 1
        %s284 = sand.u32 %s35, 1
        %s285 = scalar_lea.sflag [#allocation3], %s284
        %s286 = sand.u32 %s35, 1
        %s287 = smul.addr %s286, 8
        %s288 = scalar_lea.vmem [#allocation2], %s287
        // Predicated region
        $region49: #{tpu_custom_call.1} parent=47 // pred_check
          %p289 = pneg %p48
        $region50: #{tpu_custom_call.1} parent=47 // pred_check_branch
          %291 = sbr.rel (%p289) target = $region52
        $region51: #{tpu_custom_call.1} parent=47 // pred_region
          %292 = dma.done %s285, 128
        $region52: #{tpu_custom_call.1} parent=47 // pred_fallthru
          _
        %s293 = sand.u32 %s61, 1
        %s294 = scalar_lea.sflag [#allocation6], %s293
        %s295 = sand.u32 %s61, 1
        %s296 = smul.addr %s295, 8
        %s297 = scalar_lea.vmem [#allocation5], %s296
        // Predicated region
        $region53: #{tpu_custom_call.1} parent=47 // pred_check
          %p298 = pneg %p74
        $region54: #{tpu_custom_call.1} parent=47 // pred_check_branch
          %300 = sbr.rel (%p298) target = $region56
        $region55: #{tpu_custom_call.1} parent=47 // pred_region
          %301 = dma.done %s294, 128
        $region56: #{tpu_custom_call.1} parent=47 // pred_fallthru
          _
        %s302 = sand.u32 %s35, 1
        %s303 = scalar_lea.sflag [#allocation3], %s302
        %s304 = sand.u32 %s35, 1
        %s305 = smul.addr %s304, 8
        %s306 = scalar_lea.vmem [#allocation2], %s305
        %p307 = pneg %p48
        %p308 = pneg %p45
        %s309 = sand.u32 %s61, 1
        %s310 = scalar_lea.sflag [#allocation6], %s309
        %s311 = sand.u32 %s61, 1
        %s312 = smul.addr %s311, 8
        %s313 = scalar_lea.vmem [#allocation5], %s312
        %p314 = pneg %p74
        %p315 = pneg %p71
        %p316 = pneg %p95
        %p317 = pneg %p92
        %p318 = pneg %p116
        %p319 = pneg %p113
        %p320 = pneg %p137
        %p321 = pneg %p134
        %p322 = pneg %p158
        %p323 = pneg %p155
        %p324 = pneg %p179
        %p325 = pneg %p176
        %p326 = pneg %p205
        %p327 = pneg %p202
        %s328 = sand.u32 %s192, 1
        %s329 = scalar_lea.sflag [#allocation4], %s328
        %s330 = sand.u32 %s192, 1
        %s331 = smul.addr %s330, 8
        %s332 = scalar_lea.vmem [#allocation7], %s331
        %v333 = vld [vmem:[%s288] sm:$0xff]
        %v334 = vld [vmem:[%s297] sm:$0xff]
        %v336 = vcombine.high %v333, %v333
        %vm338 = vcmask 1043456
        %v339 = vsel %vm338, %v333, 0.0
        %v340 = vsel %vm338, %v336, 0.0
        %v341 = vadd.f32 %v339, %v340
        %342 = vadd.xlane.f32.xlu0 %v341
        %v343 = vpop.xlane.xlu0 %342
        %v344 = vmul.f32 %v343, 0.00390625
        %v346 = vcombine.high %v334, %v334
        %v348 = vsel %vm338, %v334, 0.0
        %v349 = vsel %vm338, %v346, 0.0
        %v350 = vadd.f32 %v348, %v349
        %351 = vadd.xlane.f32.xlu0 %v350
        %v352 = vpop.xlane.xlu0 %351
        %v353 = vmul.f32 %v352, 0.00390625
        %v354 = vld [vmem:[%s2] sm:$0xf]
        %v355 = vld [vmem:[%s3] sm:$0xf]
        %vm356 = vcmask 31744
        %v358 = vsel %vm356, %v355, 0
        %v361 = vsel %vm338, %v353, 0
        %363 = vmatprep.subr.mxu0 0.0
        %364 = vmatpush1.msra.mxu0 %v361
        %365 = vmatprep.subr.mxu0 0.0
        %366 = vmatpush1.msra.mxu0 0.0
        %367 = vmatprep.subr.mxu0 0.0
        %368 = vmatpush1.msra.mxu0 0.0
        %369 = vmatprep.subr.mxu0 0.0
        %370 = vmatpush1.msra.mxu0 0.0
        %371 = vmatprep.subr.mxu0 0.0
        %372 = vmatpush1.msra.mxu0 0.0
        %373 = vmatprep.subr.mxu0 0.0
        %374 = vmatpush1.msra.mxu0 0.0
        %375 = vmatprep.subr.mxu0 0.0
        %376 = vmatpush1.msra.mxu0 0.0
        %377 = vmatprep.subr.mxu0 0.0
        %378 = vmatpush1.msra.mxu0 0.0
        %379 = vmatprep.subr.mxu0 0.0
        %380 = vmatpush1.msra.mxu0 0.0
        %381 = vmatprep.subr.mxu0 0.0
        %382 = vmatpush1.msra.mxu0 0.0
        %383 = vmatprep.subr.mxu0 0.0
        %384 = vmatpush1.msra.mxu0 0.0
        %385 = vmatprep.subr.mxu0 0.0
        %386 = vmatpush1.msra.mxu0 0.0
        %387 = vmatprep.subr.mxu0 0.0
        %388 = vmatpush1.msra.mxu0 0.0
        %389 = vmatprep.subr.mxu0 0.0
        %390 = vmatpush1.msra.mxu0 0.0
        %391 = vmatprep.subr.mxu0 0.0
        %392 = vmatpush1.msra.mxu0 0.0
        %393 = vmatprep.subr.mxu0 0.0
        %394 = vmatpush1.msra.mxu0 0.0
        %395 = vmatprep.subr.mxu0 0.0
        %396 = vmatpush1.msra.mxu0 0.0
        %397 = vmatprep.subr.mxu0 0.0
        %398 = vmatpush1.msra.mxu0 0.0
        %399 = vmatprep.subr.mxu0 0.0
        %400 = vmatpush1.msra.mxu0 0.0
        %401 = vmatprep.subr.mxu0 0.0
        %402 = vmatpush1.msra.mxu0 0.0
        %403 = vmatprep.subr.mxu0 0.0
        %404 = vmatpush1.msra.mxu0 0.0
        %405 = vmatprep.subr.mxu0 0.0
        %406 = vmatpush1.msra.mxu0 0.0
        %407 = vmatprep.subr.mxu0 0.0
        %408 = vmatpush1.msra.mxu0 0.0
        %409 = vmatprep.subr.mxu0 0.0
        %410 = vmatpush1.msra.mxu0 0.0
        %411 = vmatprep.subr.mxu0 0.0
        %412 = vmatpush1.msra.mxu0 0.0
        %413 = vmatprep.subr.mxu0 0.0
        %414 = vmatpush1.msra.mxu0 0.0
        %415 = vmatprep.subr.mxu0 0.0
        %416 = vmatpush1.msra.mxu0 0.0
        %417 = vmatprep.subr.mxu0 0.0
        %418 = vmatpush1.msra.mxu0 0.0
        %419 = vmatprep.subr.mxu0 0.0
        %420 = vmatpush1.msra.mxu0 0.0
        %421 = vmatprep.subr.mxu0 0.0
        %422 = vmatpush1.msra.mxu0 0.0
        %423 = vmatprep.subr.mxu0 0.0
        %424 = vmatpush1.msra.mxu0 0.0
        %425 = vmatprep.subr.mxu0 0.0
        %426 = vmatpush1.msra.mxu0 0.0
        %427 = vmatprep.mubr.f32.mxu0 0.0
        %428 = vmatmul.mubr.f32.gmra.mrb[0].mxu0 %v358
        %v429 = vpop.f32.mrb[0].mxu0
        %v430 = vadd.f32 0.0, %v429
        %v431 = vpop.f32.mrb[0].mxu0
        %432 = vdwg.mxu0
        %v434 = vsel %vm356, %v354, 0
        %v437 = vsel %vm338, %v344, 0
        %439 = vmatprep.subr.mxu0 0.0
        %440 = vmatpush1.msra.mxu0 %v437
        %441 = vmatprep.subr.mxu0 0.0
        %442 = vmatpush1.msra.mxu0 0.0
        %443 = vmatprep.subr.mxu0 0.0
        %444 = vmatpush1.msra.mxu0 0.0
        %445 = vmatprep.subr.mxu0 0.0
        %446 = vmatpush1.msra.mxu0 0.0
        %447 = vmatprep.subr.mxu0 0.0
        %448 = vmatpush1.msra.mxu0 0.0
        %449 = vmatprep.subr.mxu0 0.0
        %450 = vmatpush1.msra.mxu0 0.0
        %451 = vmatprep.subr.mxu0 0.0
        %452 = vmatpush1.msra.mxu0 0.0
        %453 = vmatprep.subr.mxu0 0.0
        %454 = vmatpush1.msra.mxu0 0.0
        %455 = vmatprep.subr.mxu0 0.0
        %456 = vmatpush1.msra.mxu0 0.0
        %457 = vmatprep.subr.mxu0 0.0
        %458 = vmatpush1.msra.mxu0 0.0
        %459 = vmatprep.subr.mxu0 0.0
        %460 = vmatpush1.msra.mxu0 0.0
        %461 = vmatprep.subr.mxu0 0.0
        %462 = vmatpush1.msra.mxu0 0.0
        %463 = vmatprep.subr.mxu0 0.0
        %464 = vmatpush1.msra.mxu0 0.0
        %465 = vmatprep.subr.mxu0 0.0
        %466 = vmatpush1.msra.mxu0 0.0
        %467 = vmatprep.subr.mxu0 0.0
        %468 = vmatpush1.msra.mxu0 0.0
        %469 = vmatprep.subr.mxu0 0.0
        %470 = vmatpush1.msra.mxu0 0.0
        %471 = vmatprep.subr.mxu0 0.0
        %472 = vmatpush1.msra.mxu0 0.0
        %473 = vmatprep.subr.mxu0 0.0
        %474 = vmatpush1.msra.mxu0 0.0
        %475 = vmatprep.subr.mxu0 0.0
        %476 = vmatpush1.msra.mxu0 0.0
        %477 = vmatprep.subr.mxu0 0.0
        %478 = vmatpush1.msra.mxu0 0.0
        %479 = vmatprep.subr.mxu0 0.0
        %480 = vmatpush1.msra.mxu0 0.0
        %481 = vmatprep.subr.mxu0 0.0
        %482 = vmatpush1.msra.mxu0 0.0
        %483 = vmatprep.subr.mxu0 0.0
        %484 = vmatpush1.msra.mxu0 0.0
        %485 = vmatprep.subr.mxu0 0.0
        %486 = vmatpush1.msra.mxu0 0.0
        %487 = vmatprep.subr.mxu0 0.0
        %488 = vmatpush1.msra.mxu0 0.0
        %489 = vmatprep.subr.mxu0 0.0
        %490 = vmatpush1.msra.mxu0 0.0
        %491 = vmatprep.subr.mxu0 0.0
        %492 = vmatpush1.msra.mxu0 0.0
        %493 = vmatprep.subr.mxu0 0.0
        %494 = vmatpush1.msra.mxu0 0.0
        %495 = vmatprep.subr.mxu0 0.0
        %496 = vmatpush1.msra.mxu0 0.0
        %497 = vmatprep.subr.mxu0 0.0
        %498 = vmatpush1.msra.mxu0 0.0
        %499 = vmatprep.subr.mxu0 0.0
        %500 = vmatpush1.msra.mxu0 0.0
        %501 = vmatprep.subr.mxu0 0.0
        %502 = vmatpush1.msra.mxu0 0.0
        %503 = vmatprep.mubr.f32.mxu0 0.0
        %504 = vmatmul.mubr.f32.gmra.mrb[0].mxu0 %v434
        %v505 = vpop.f32.mrb[0].mxu0
        %v506 = vadd.f32 %v430, %v505
        %v507 = vpop.f32.mrb[0].mxu0
        %508 = vdwg.mxu0
        %v509 = vld [vmem:[%s4] sm:$0xf]
        %v510 = vadd.f32 %v506, %v509
        %v511 = vmax.f32 %v510, 0.0
        %v512 = vld [vmem:[%s5] sm:$0xf]
        %v513 = vld [vmem:[%s6] sm:$0xf]
        %v515 = vsel %vm356, %v512, 0
        %v518 = vsel %vm338, %v511, 0
        %520 = vmatprep.subr.mxu0 0.0
        %521 = vmatpush1.msra.mxu0 %v518
        %522 = vmatprep.subr.mxu0 0.0
        %523 = vmatpush1.msra.mxu0 0.0
        %524 = vmatprep.subr.mxu0 0.0
        %525 = vmatpush1.msra.mxu0 0.0
        %526 = vmatprep.subr.mxu0 0.0
        %527 = vmatpush1.msra.mxu0 0.0
        %528 = vmatprep.subr.mxu0 0.0
        %529 = vmatpush1.msra.mxu0 0.0
        %530 = vmatprep.subr.mxu0 0.0
        %531 = vmatpush1.msra.mxu0 0.0
        %532 = vmatprep.subr.mxu0 0.0
        %533 = vmatpush1.msra.mxu0 0.0
        %534 = vmatprep.subr.mxu0 0.0
        %535 = vmatpush1.msra.mxu0 0.0
        %536 = vmatprep.subr.mxu0 0.0
        %537 = vmatpush1.msra.mxu0 0.0
        %538 = vmatprep.subr.mxu0 0.0
        %539 = vmatpush1.msra.mxu0 0.0
        %540 = vmatprep.subr.mxu0 0.0
        %541 = vmatpush1.msra.mxu0 0.0
        %542 = vmatprep.subr.mxu0 0.0
        %543 = vmatpush1.msra.mxu0 0.0
        %544 = vmatprep.subr.mxu0 0.0
        %545 = vmatpush1.msra.mxu0 0.0
        %546 = vmatprep.subr.mxu0 0.0
        %547 = vmatpush1.msra.mxu0 0.0
        %548 = vmatprep.subr.mxu0 0.0
        %549 = vmatpush1.msra.mxu0 0.0
        %550 = vmatprep.subr.mxu0 0.0
        %551 = vmatpush1.msra.mxu0 0.0
        %552 = vmatprep.subr.mxu0 0.0
        %553 = vmatpush1.msra.mxu0 0.0
        %554 = vmatprep.subr.mxu0 0.0
        %555 = vmatpush1.msra.mxu0 0.0
        %556 = vmatprep.subr.mxu0 0.0
        %557 = vmatpush1.msra.mxu0 0.0
        %558 = vmatprep.subr.mxu0 0.0
        %559 = vmatpush1.msra.mxu0 0.0
        %560 = vmatprep.subr.mxu0 0.0
        %561 = vmatpush1.msra.mxu0 0.0
        %562 = vmatprep.subr.mxu0 0.0
        %563 = vmatpush1.msra.mxu0 0.0
        %564 = vmatprep.subr.mxu0 0.0
        %565 = vmatpush1.msra.mxu0 0.0
        %566 = vmatprep.subr.mxu0 0.0
        %567 = vmatpush1.msra.mxu0 0.0
        %568 = vmatprep.subr.mxu0 0.0
        %569 = vmatpush1.msra.mxu0 0.0
        %570 = vmatprep.subr.mxu0 0.0
        %571 = vmatpush1.msra.mxu0 0.0
        %572 = vmatprep.subr.mxu0 0.0
        %573 = vmatpush1.msra.mxu0 0.0
        %574 = vmatprep.subr.mxu0 0.0
        %575 = vmatpush1.msra.mxu0 0.0
        %576 = vmatprep.subr.mxu0 0.0
        %577 = vmatpush1.msra.mxu0 0.0
        %578 = vmatprep.subr.mxu0 0.0
        %579 = vmatpush1.msra.mxu0 0.0
        %580 = vmatprep.subr.mxu0 0.0
        %581 = vmatpush1.msra.mxu0 0.0
        %582 = vmatprep.subr.mxu0 0.0
        %583 = vmatpush1.msra.mxu0 0.0
        %584 = vmatprep.mubr.f32.mxu0 0.0
        %585 = vmatmul.mubr.f32.gmra.mrb[0].mxu0 %v515
        %v586 = vpop.f32.mrb[0].mxu0
        %v587 = vadd.f32 %v513, %v586
        %v588 = vpop.f32.mrb[0].mxu0
        %589 = vdwg.mxu0
        %v590 = vxor.u32 %v587, 2147483648
        %v591 = vmul.f32 %v590, 1.442695
        %v592 = vpow.pop %v591
        %v593 = vadd.f32 %v592, 1.0
        %v594 = vrcp.pop %v593
        %v595 = vmul.f32 1.0, %v594
        %597 = vset.pattern.permute.xlu0 0
        %598 = vperm.xlu0 %597, %v595
        %v599 = vpop.permute.xlu0 %598
        %v601 = vmul.f32 %v599, %v334
        %v602 = vmul.f32 %v599, %v346
        %v603 = vadd.f32 %v601, %v333
        %v604 = vadd.f32 %v602, %v336
        %v607 = vcombine.low %v603, %v604
        %609 = vst [vmem:[%s332] sm:$0xff] %v607
        %s610 = sand.u32 %s192, 1
        %s611 = scalar_lea.sflag [#allocation4], %s610
        %s612 = sand.u32 %s192, 1
        %s613 = smul.addr %s612, 8
        %s614 = scalar_lea.vmem [#allocation7], %s613
        // Predicated region
        $region57: #{tpu_custom_call.1} parent=47 // pred_check
          %p615 = pneg %p202
        $region58: #{tpu_custom_call.1} parent=47 // pred_check_branch
          %617 = sbr.rel (%p615) target = $region60
        $region59: #{tpu_custom_call.1} parent=47 // pred_region
          %s619 = ssub.s32 128, 128
          %620 = vsyncadd %s611, %s619
          %s621 = smul.addr %s27, 2
          %s622 = smul.addr %s621, 64
          %s623 = scalar_lea.hbm %s7, %s622
          %s625 = sshll.u32 %s614, 4
          %s626 = int_to_ptr.vmem [resolvable:$true] %s625
          %628 = dma.vmem_to_hbm [thread:$0]  %s626, 128, %s623, %s611
        $region60: #{tpu_custom_call.1} parent=47 // pred_fallthru
          _
      $region48: #{tpu_custom_call.1} parent=5 // pred_fallthru
        _
      %p629 = scmp.le.s32.totalorder 2, %s22
      // Predicated region
      $region61: #{tpu_custom_call.1} parent=5 // pred_check
        %p630 = pneg %p629
      $region62: #{tpu_custom_call.1} parent=5 // pred_check_branch
        %632 = sbr.rel (%p630) target = $region64
      $region63: #{tpu_custom_call.1} parent=5 // pred_region
        %s633 = ssub.s32 %s22, 2
        // Predicated region
        $region65: #{tpu_custom_call.1} parent=63 // pred_check
          %p634 = pneg %p208
        $region66: #{tpu_custom_call.1} parent=63 // pred_check_branch
          %636 = sbr.rel (%p634) target = $region68
        $region67: #{tpu_custom_call.1} parent=63 // pred_region
          %s637 = sand.u32 %s193, 1
          %s638 = scalar_lea.sflag [#allocation4], %s637
          %s639 = sand.u32 %s193, 1
          %s640 = smul.addr %s639, 8
          %s641 = scalar_lea.vmem [#allocation7], %s640
          %642 = dma.done %s638, 128
        $region68: #{tpu_custom_call.1} parent=63 // pred_fallthru
          _
      $region64: #{tpu_custom_call.1} parent=5 // pred_fallthru
        _
    $region6: #{tpu_custom_call.1} parent=1 // loop_footer
      %s26 = sadd.s32 1, %s22
    $region7: #{tpu_custom_call.1} parent=1 // loop_footer_branch
      %21 = sbr.rel target = $region3
    $region8: #{tpu_custom_call.1} parent=1 // loop_exit
      _
    %643 = vsyncpa [#allocation3], 1
    %s644 = scalar_lea.sflag [#allocation3], 1
    %645 = vsyncpa %s644, 1
    %646 = vsyncpa [#allocation6], 1
    %s647 = scalar_lea.sflag [#allocation6], 1
    %648 = vsyncpa %s647, 1
    %649 = vsyncpa [#allocation4], 1
    %s650 = scalar_lea.sflag [#allocation4], 1
    %651 = vsyncpa %s650, 1

</llo_original>
